<compile_context>
chip_gen: v6e
topology: v6e:2x2x1
jax: 0.10.0
libtpu: 0.0.40
codegen_flags: <defaults>
</compile_context>

<pallas_src>
import functools

import jax
import jax.numpy as jnp
from jax.experimental import pallas as pl
from jax.experimental.pallas import tpu as pltpu


# -----------------------------------------------------------------------------
# Helpers
# -----------------------------------------------------------------------------
def _round_up(x, m):
    return (x + m - 1) // m * m


def _sublane(dtype):
    """Sublane (second-to-last dim) alignment for a dtype (packed rows)."""
    return {4: 8, 2: 16, 1: 32}.get(jnp.dtype(dtype).itemsize, 8)


@functools.lru_cache(maxsize=None)
def _vmem_limit_bytes():
    """Generation-aware VMEM budget: ~half of physical (64 MiB v5e/v6e, 32 MiB v7x)."""
    cap = 64 * 1024 * 1024
    try:
        info = pltpu.get_tpu_info()
        cap = int(getattr(info, "vmem_capacity_bytes", cap))
    except Exception:
        pass
    return int(min(cap // 2, 64 * 1024 * 1024))


def _largest_divisor_tile(dim, align, cap, floor):
    """Largest multiple of `align` in [floor, cap] that divides `dim`, else None."""
    cand = (cap // align) * align
    while cand >= floor:
        if dim % cand == 0:
            return cand
        cand -= align
    return None


def _plan_dim(dim, align, cap, floor=None):
    """Return (padded_dim, tile): padded_dim % tile == 0, tile % align == 0,
    tile <= cap, minimal padding of `dim` (align first, 128-multiple only if forced)."""
    floor = floor if floor is not None else align
    d = _round_up(dim, align)
    if d <= cap:
        return d, d
    t = _largest_divisor_tile(d, align, cap, floor)
    if t is None:
        d = _round_up(d, floor)
        t = _largest_divisor_tile(d, align, cap, floor) or floor
    return d, t


# -----------------------------------------------------------------------------
# Matmul kernels (y = x @ W.T, bias-free)
# -----------------------------------------------------------------------------
def _matmul_kernel_f32(x_ref, wt_ref, o_ref):
    """f32 output: accumulate directly into the resident output block (no scratch,
    no epilogue copy). Output index_map ignores k, so the block stays in VMEM."""

    @pl.when(pl.program_id(2) == 0)
    def _init():
        o_ref[...] = jnp.zeros_like(o_ref)

    o_ref[...] += jnp.dot(x_ref[...], wt_ref[...], preferred_element_type=jnp.float32)


def _matmul_kernel_acc(x_ref, wt_ref, o_ref, acc_ref):
    """Non-f32 output: accumulate in an f32 VMEM scratch, cast on the last K step."""

    @pl.when(pl.program_id(2) == 0)
    def _init():
        acc_ref[...] = jnp.zeros_like(acc_ref)

    acc_ref[...] += jnp.dot(x_ref[...], wt_ref[...], preferred_element_type=jnp.float32)

    @pl.when(pl.program_id(2) == pl.num_programs(2) - 1)
    def _done():
        o_ref[...] = acc_ref[...].astype(o_ref.dtype)


def linear_nobias(x2d, wt_padded, out_dim, *, tm_cap=512, tn_cap=512, tk_cap=1024):
    """y = x2d @ W.T.  x2d: (M, K); wt_padded: (Kp, Np) pre-transposed, pre-padded W."""
    M, K = x2d.shape
    Kp, Np = wt_padded.shape
    assert Kp == _round_up(K, 128) and Np == _round_up(out_dim, 128), (Kp, Np, K, out_dim)

    sub = _sublane(x2d.dtype)
    Mp, tm = _plan_dim(M, sub, tm_cap, floor=128)   # M padded only to the sublane mult
    Kp2, tk = _plan_dim(K, 128, tk_cap)             # K padded only to 128
    Np2, tn = _plan_dim(out_dim, 128, tn_cap)
    assert Kp2 == Kp and Np2 == Np

    # v7x has 2 TensorCores that only get work via >=2 blocks on a parallel axis.
    # Split N when the parallel grid collapsed to one block: it only duplicates the
    # (small) activation stream, never the weight stream.
    if Mp // tm == 1 and Np // tn == 1 and Np >= 256:
        tn = _largest_divisor_tile(Np, 128, Np // 2, 128) or tn

    if (Mp, Kp) != (M, K):
        x2d = jnp.pad(x2d, ((0, Mp - M), (0, Kp - K)))   # zeros -> exact result

    out_dtype = x2d.dtype
    itemsize = jnp.dtype(out_dtype).itemsize
    grid = (Mp // tm, Np // tn, Kp // tk)

    if out_dtype == jnp.float32:
        kernel, scratch = _matmul_kernel_f32, []
    else:
        kernel, scratch = _matmul_kernel_acc, [pltpu.VMEM((tm, tn), jnp.float32)]

    out = pl.pallas_call(
        kernel,
        out_shape=jax.ShapeDtypeStruct((Mp, Np), out_dtype),
        grid_spec=pltpu.PrefetchScalarGridSpec(
            num_scalar_prefetch=0,
            grid=grid,
            in_specs=[
                pl.BlockSpec((tm, tk), lambda i, j, k: (i, k)),
                pl.BlockSpec((tk, tn), lambda i, j, k: (k, j)),
            ],
            out_specs=pl.BlockSpec((tm, tn), lambda i, j, k: (i, j)),
            scratch_shapes=scratch,
        ),
        compiler_params=pltpu.CompilerParams(
            dimension_semantics=("parallel", "parallel", "arbitrary"),
            vmem_limit_bytes=_vmem_limit_bytes(),
        ),
        cost_estimate=pl.CostEstimate(
            flops=2 * Mp * Kp * Np,
            transcendentals=0,
            bytes_accessed=(grid[1] * Mp * Kp + grid[0] * Kp * Np + Mp * Np) * itemsize,
        ),
    )(x2d, wt_padded)
    return out[:M, :out_dim]


# -----------------------------------------------------------------------------
# Fused AdaptiveAvgPool2d((1,1)) + Linear(1, out_dim) kernels (squeeze=True path)
# -----------------------------------------------------------------------------
def _pool_linear_onepass_kernel(x_ref, w_ref, o_ref, *, inv_hw):
    """Whole H*W per block (no H*W padding): mean over last axis, outer-prod with W[:,0]."""
    s = jnp.sum(x_ref[...].astype(jnp.float32), axis=-1, keepdims=True) * inv_hw   # (tr,1)
    o_ref[...] = (s * w_ref[...].astype(jnp.float32)).astype(o_ref.dtype)


def _pool_linear_tiled_kernel(x_ref, w_ref, o_ref, acc_ref, *, inv_hw):
    """Huge H*W fallback: lane-dense (tr,128) per-lane partial sums per step (pure VPU
    adds of the thw/128 vreg columns); the single cross-lane reduce runs once at the end."""
    k = pl.program_id(1)

    @pl.when(k == 0)
    def _init():
        acc_ref[...] = jnp.zeros_like(acc_ref)

    x = x_ref[...].astype(jnp.float32)            # (tr, thw), thw % 128 == 0
    n_chunks = x.shape[1] // 128
    partial = x[:, 0:128]
    for c in range(1, n_chunks):                  # static VPU adds, no XLU per step
        partial = partial + x[:, c * 128:(c + 1) * 128]
    acc_ref[...] += partial

    @pl.when(k == pl.num_programs(1) - 1)
    def _done():
        s = jnp.sum(acc_ref[...], axis=-1, keepdims=True) * inv_hw   # (tr, 1)
        o_ref[...] = (s * w_ref[...].astype(jnp.float32)).astype(o_ref.dtype)


def pool_and_linear(x_nchw, w_row_padded, out_dim):
    """x_nchw: (N, C, H, W); w_row_padded: (1, Np) pre-padded W[:, 0]. -> (N, C, 1, out_dim)."""
    N, C, H, W = x_nchw.shape
    R, HW = N * C, H * W
    Np = w_row_padded.shape[1]
    assert Np == _round_up(out_dim, 128)

    flat = x_nchw.reshape(R, HW)                  # contiguous NCHW reshape: free
    sub = _sublane(flat.dtype)
    itemsize = jnp.dtype(flat.dtype).itemsize
    vmem_limit = _vmem_limit_bytes()
    buf_budget = 4 * 1024 * 1024                  # per input buffer (double-buffered)
    inv_hw = 1.0 / float(HW)

    if HW * itemsize * sub <= buf_budget:
        # Typical feature maps: full H*W per block -> H*W is never padded in HBM.
        tr_cap = min(512, max(sub, (buf_budget // (HW * itemsize)) // sub * sub))
        Rp, tr = _plan_dim(R, sub, tr_cap, floor=sub)
        if Rp // tr == 1 and Rp >= 2 * sub:       # give v7x's 2nd TensorCore work
            tr = _largest_divisor_tile(Rp, sub, Rp // 2, sub) or tr
        if Rp != R:
            flat = jnp.pad(flat, ((0, Rp - R), (0, 0)))
        out = pl.pallas_call(
            functools.partial(_pool_linear_onepass_kernel, inv_hw=inv_hw),
            out_shape=jax.ShapeDtypeStruct((Rp, Np), x_nchw.dtype),
            grid_spec=pltpu.PrefetchScalarGridSpec(
                num_scalar_prefetch=0,
                grid=(Rp // tr,),
                in_specs=[
                    pl.BlockSpec((tr, HW), lambda i: (i, 0)),
                    pl.BlockSpec((1, Np), lambda i: (0, 0)),
                ],
                out_specs=pl.BlockSpec((tr, Np), lambda i: (i, 0)),
            ),
            compiler_params=pltpu.CompilerParams(
                dimension_semantics=("parallel",),
                vmem_limit_bytes=vmem_limit,
            ),
            cost_estimate=pl.CostEstimate(
                flops=Rp * HW + 2 * Rp * Np,
                transcendentals=0,
                bytes_accessed=(Rp * HW + Rp * Np + Np) * itemsize,
            ),
        )(flat, w_row_padded)
    else:
        # Huge feature maps: tile H*W (padded only to a multiple of 128).
        HWp, thw = _plan_dim(HW, 128, 2048)
        Rp, tr = _plan_dim(R, sub, 256, floor=sub)
        if Rp // tr == 1 and Rp >= 2 * sub:
            tr = _largest_divisor_tile(Rp, sub, Rp // 2, sub) or tr
        if (Rp, HWp) != (R, HW):
            flat = jnp.pad(flat, ((0, Rp - R), (0, HWp - HW)))
        out = pl.pallas_call(
            functools.partial(_pool_linear_tiled_kernel, inv_hw=inv_hw),
            out_shape=jax.ShapeDtypeStruct((Rp, Np), x_nchw.dtype),
            grid_spec=pltpu.PrefetchScalarGridSpec(
                num_scalar_prefetch=0,
                grid=(Rp // tr, HWp // thw),
                in_specs=[
                    pl.BlockSpec((tr, thw), lambda i, k: (i, k)),
                    pl.BlockSpec((1, Np), lambda i, k: (0, 0)),
                ],
                out_specs=pl.BlockSpec((tr, Np), lambda i, k: (i, 0)),
                scratch_shapes=[pltpu.VMEM((tr, 128), jnp.float32)],
            ),
            compiler_params=pltpu.CompilerParams(
                dimension_semantics=("parallel", "arbitrary"),
                vmem_limit_bytes=vmem_limit,
            ),
            cost_estimate=pl.CostEstimate(
                flops=Rp * HWp + 2 * Rp * Np,
                transcendentals=0,
                bytes_accessed=(Rp * HWp + Rp * Np + Np) * itemsize,
            ),
        )(flat, w_row_padded)

    return out[:R, :out_dim].reshape(N, C, 1, out_dim)


# -----------------------------------------------------------------------------
# Module
# -----------------------------------------------------------------------------
class Classifier:
    """JAX/Pallas port of the PyTorch Classifier module (bias-free Linear)."""

    def __init__(self, in_dim, out_dim, squeeze=False, key=None):
        if key is None:
            key = jax.random.PRNGKey(0)
        # nn.Linear init: uniform(-1/sqrt(in_dim), 1/sqrt(in_dim)), weight (out, in).
        bound = 1.0 / float(in_dim) ** 0.5
        self.weight = jax.random.uniform(
            key, (out_dim, in_dim), dtype=jnp.float32, minval=-bound, maxval=bound
        )
        self.in_dim = in_dim
        self.out_dim = out_dim
        self.squeeze = squeeze

        # Transpose + zero-pad ONCE (cached): no per-call HBM pad/transpose of W.
        Kp = _round_up(in_dim, 128)
        Np = _round_up(out_dim, 128)
        self.weight_t_padded = jnp.pad(
            self.weight.T, ((0, Kp - in_dim), (0, Np - out_dim))
        )
        if squeeze:
            self.w_row_padded = self.weight_t_padded[:1, :]   # (1, Np) = W[:, 0] padded

    def __call__(self, x):
        if self.squeeze:
            # Fused pool + linear. Only shape-valid for in_dim == 1, exactly like the
            # PyTorch nn.Sequential(AdaptiveAvgPool2d((1,1)), Linear) on NCHW input.
            if self.in_dim != 1:
                raise ValueError(
                    "squeeze=True is only shape-valid for in_dim == 1 "
                    "(mirrors the PyTorch module)."
                )
            return pool_and_linear(x, self.w_row_padded, self.out_dim)
        lead = x.shape[:-1]
        y2d = linear_nobias(
            x.reshape(-1, self.in_dim), self.weight_t_padded, self.out_dim
        )
        return y2d.reshape(*lead, self.out_dim)


# -----------------------------------------------------------------------------
# Demo / self-check
# -----------------------------------------------------------------------------
if __name__ == "__main__":
    key = jax.random.PRNGKey(0)
    k_x, k_w1, k_x2, k_w2, k_x3, k_w3 = jax.random.split(key, 6)

    # --- squeeze=False, tiny: plain bias-free Linear ---------------------------
    B, IN, OUT = 8, 32, 16
    x = jax.random.normal(k_x, (B, IN), dtype=jnp.float32)
    clf = Classifier(IN, OUT, squeeze=False, key=k_w1)
    y = clf(x)
    jax.block_until_ready(y)
    y_ref = x @ clf.weight.T
    assert y.shape == (B, OUT)
    assert jnp.allclose(y, y_ref, atol=1e-5, rtol=1e-5)

    # --- squeeze=False, ragged shapes: exercises minimal padding + N split -----
    M2, K2, N2 = 260, 1000, 200
    x2 = jax.random.normal(k_x3, (M2, K2), dtype=jnp.float32)
    clf2 = Classifier(K2, N2, squeeze=False, key=k_w3)
    y2 = clf2(x2)
    jax.block_until_ready(y2)
    y2_ref = x2 @ clf2.weight.T
    assert y2.shape == (M2, N2)
    assert jnp.allclose(y2, y2_ref, atol=1e-4, rtol=1e-4)

    # --- squeeze=True: fused AdaptiveAvgPool2d((1,1)) + Linear (in_dim == 1) ----
    N, C, H, W = 2, 4, 16, 16
    x_nchw = jax.random.normal(k_x2, (N, C, H, W), dtype=jnp.float32)
    clf_sq = Classifier(1, OUT, squeeze=True, key=k_w2)
    y_sq = clf_sq(x_nchw)
    jax.block_until_ready(y_sq)
    pooled_ref = jnp.mean(x_nchw, axis=(2, 3), keepdims=True)        # (N, C, 1, 1)
    y_sq_ref = pooled_ref @ clf_sq.weight.T                          # (N, C, 1, OUT)
    assert y_sq.shape == (N, C, 1, OUT)
    assert jnp.allclose(y_sq, y_sq_ref, atol=1e-5, rtol=1e-5)

    print("KERNEL_OK")
</pallas_src>

<mosaic_0001>
module attributes {stable_mosaic.version = 11 : i64} {
  func.func @_matmul_kernel_f32(%arg0: i32, %arg1: i32, %arg2: i32, %arg3: memref<8x128xf32, #tpu.memory_space<vmem>>, %arg4: memref<128x128xf32, #tpu.memory_space<vmem>>, %arg5: memref<8x128xf32, #tpu.memory_space<vmem>>) attributes {dimension_semantics = [#tpu.dimension_semantics<parallel>, #tpu.dimension_semantics<parallel>, #tpu.dimension_semantics<arbitrary>], iteration_bounds = array<i64: 1, 1, 1>, scalar_prefetch = 0 : i64, scratch_operands = 0 : i64, tpu.core_type = #tpu.core_type<tc>, window_params = [{transform_indices = @transform_0, window_bounds = array<i64: 8, 128>}, {transform_indices = @transform_1, window_bounds = array<i64: 128, 128>}, {transform_indices = @transform_2, window_bounds = array<i64: 8, 128>}]} {
    %c0_i32 = arith.constant 0 : i32
    %0 = arith.cmpi eq, %arg2, %c0_i32 : i32
    %1 = arith.extui %0 : i1 to i32
    %c0_i32_0 = arith.constant 0 : i32
    %2 = arith.cmpi ne, %1, %c0_i32_0 : i32
    scf.if %2 {
      %cst_8 = arith.constant 0.000000e+00 : f32
      %9 = vector.broadcast %cst_8 : f32 to vector<8x128xf32>
      %c0_9 = arith.constant 0 : index
      %c0_10 = arith.constant 0 : index
      %10 = vector.load %arg5[%c0_9, %c0_10] : memref<8x128xf32, #tpu.memory_space<vmem>>, vector<8x128xf32>
      tpu.vector_store %arg5[%c0_9, %c0_10], %9 {strides = array<i32>} : memref<8x128xf32, #tpu.memory_space<vmem>>, vector<8x128xf32>,
    } else {
    }
    %c0 = arith.constant 0 : index
    %c0_1 = arith.constant 0 : index
    %3 = vector.load %arg5[%c0, %c0_1] : memref<8x128xf32, #tpu.memory_space<vmem>>, vector<8x128xf32>
    %c0_2 = arith.constant 0 : index
    %c0_3 = arith.constant 0 : index
    %4 = vector.load %arg3[%c0_2, %c0_3] : memref<8x128xf32, #tpu.memory_space<vmem>>, vector<8x128xf32>
    %c0_4 = arith.constant 0 : index
    %c0_5 = arith.constant 0 : index
    %5 = vector.load %arg4[%c0_4, %c0_5] : memref<128x128xf32, #tpu.memory_space<vmem>>, vector<128x128xf32>
    %cst = arith.constant dense<0.000000e+00> : vector<8x128xf32>
    %6 = tpu.matmul %4, %5, %cst {dimension_numbers = #tpu.dot_dimension_numbers<[1], [0], [0], [1], [0, 0, 1, 1], [], []>} : vector<8x128xf32>, vector<128x128xf32>, vector<8x128xf32> -> vector<8x128xf32>
    %7 = arith.addf %3, %6 : vector<8x128xf32>
    %c0_6 = arith.constant 0 : index
    %c0_7 = arith.constant 0 : index
    %8 = vector.load %arg5[%c0_6, %c0_7] : memref<8x128xf32, #tpu.memory_space<vmem>>, vector<8x128xf32>
    tpu.vector_store %arg5[%c0_6, %c0_7], %7 {strides = array<i32>} : memref<8x128xf32, #tpu.memory_space<vmem>>, vector<8x128xf32>,
    return
  }
  func.func @transform_0(%arg0: i32, %arg1: i32, %arg2: i32) -> (i32, i32) {
    %c0_i32 = arith.constant 0 : i32
    return %arg0, %arg2 : i32, i32
  }
  func.func @transform_1(%arg0: i32, %arg1: i32, %arg2: i32) -> (i32, i32) {
    %c0_i32 = arith.constant 0 : i32
    return %arg2, %arg1 : i32, i32
  }
  func.func @transform_2(%arg0: i32, %arg1: i32, %arg2: i32) -> (i32, i32) {
    %c0_i32 = arith.constant 0 : i32
    return %arg0, %arg1 : i32, i32
  }
}

</mosaic_0001>

<llo_original>
// kernel: tpu_custom_call.1
$region0: #{tpu_custom_call.1}
  #allocation0 [shape = 'u32[]', space=smem, size = 0x4, offset = 0x4, fixed_abs, tag = 'smem constant byte address 0x4 - core index']
  #allocation1 [shape = 'u32[144,128]{1,0:T(1,128)}', space=vmem, size = 0x12000, scoped, tag = 'internal scratch']
  %s0 = inlined_call_operand.hbm [shape: f32[8,128], index: 0, kind: input, shape index: {}]
  %s1 = inlined_call_operand.hbm [shape: f32[128,128], index: 1, kind: input, shape index: {}]
  %s2 = inlined_call_operand.hbm [shape: f32[8,128], index: 2, kind: output, shape index: {}]
  %s3 = sld [smem:[#allocation0]]
  $region30: #{tpu_custom_call.1} parent=0
    _
  %s5 = ssub.s32 1, %s3
  %s6 = scalar_select 0, %s5, %s3
  $region1: #{tpu_custom_call.1} parent=0
    #allocation2 [shape = 'u8[4096]{0}', space=vmem, size = 0x1000, scoped, tag = 'input window, operand 0, single buffered']
    #allocation3 [shape = 's32[1]{0}', space=sflag, size = 0x4, scoped, tag = 'scoped memory for tpu_custom_call.1']
    #allocation4 [shape = 's32[1]{0}', space=sflag, size = 0x4, scoped, tag = 'scoped memory for tpu_custom_call.1']
    #allocation5 [shape = 'u8[65536]{0}', space=vmem, size = 0x10000, scoped, tag = 'input window, operand 1, single buffered']
    #allocation6 [shape = 's32[1]{0}', space=sflag, size = 0x4, scoped, tag = 'scoped memory for tpu_custom_call.1']
    #allocation7 [shape = 'u8[4096]{0}', space=vmem, size = 0x1000, scoped, tag = 'output window, operand 0, single buffered']
    %7 = vsyncpa [#allocation3], 0
    %8 = vsyncpa [#allocation6], 0
    %9 = vsyncpa [#allocation4], 0
    // Predicated region
    $region2: #{tpu_custom_call.1} parent=1 // pred_check
      _
    $region3: #{tpu_custom_call.1} parent=1 // pred_check_branch
      %11 = sbr.rel (0) target = $region5
    $region4: #{tpu_custom_call.1} parent=1 // pred_region
      %s13 = ssub.s32 128, 128
      %14 = vsyncadd [#allocation3], %s13
      %s16 = sshll.u32 [#allocation2], 4
      %s17 = int_to_ptr.vmem [resolvable:$true] %s16
      %19 = dma.hbm_to_vmem [thread:$0]  %s0, 128, %s17, [#allocation3]
    $region5: #{tpu_custom_call.1} parent=1 // pred_fallthru
      _
    // Predicated region
    $region6: #{tpu_custom_call.1} parent=1 // pred_check
      _
    $region7: #{tpu_custom_call.1} parent=1 // pred_check_branch
      %21 = sbr.rel (0) target = $region9
    $region8: #{tpu_custom_call.1} parent=1 // pred_region
      %s23 = ssub.s32 2048, 2048
      %24 = vsyncadd [#allocation6], %s23
      %s25 = sshll.u32 [#allocation5], 4
      %s26 = int_to_ptr.vmem [resolvable:$true] %s25
      %31 = dma.hbm_to_vmem [thread:$0]  %s1, 2048, %s26, [#allocation6], 128, 128, 8
    $region9: #{tpu_custom_call.1} parent=1 // pred_fallthru
      _
    // Predicated region
    $region10: #{tpu_custom_call.1} parent=1 // pred_check
      _
    $region11: #{tpu_custom_call.1} parent=1 // pred_check_branch
      %33 = sbr.rel (0) target = $region13
    $region12: #{tpu_custom_call.1} parent=1 // pred_region
      %34 = dma.done [#allocation3], 128
    $region13: #{tpu_custom_call.1} parent=1 // pred_fallthru
      _
    // Predicated region
    $region14: #{tpu_custom_call.1} parent=1 // pred_check
      _
    $region15: #{tpu_custom_call.1} parent=1 // pred_check_branch
      %36 = sbr.rel (0) target = $region17
    $region16: #{tpu_custom_call.1} parent=1 // pred_region
      %37 = dma.done [#allocation6], 2048
    $region17: #{tpu_custom_call.1} parent=1 // pred_fallthru
      _
    %p38 = scmp.eq.s32.totalorder 0, 0
    // Predicated region
    $region18: #{tpu_custom_call.1} parent=1 // pred_check
      %p39 = pneg %p38
    $region19: #{tpu_custom_call.1} parent=1 // pred_check_branch
      %41 = sbr.rel (%p39) target = $region21
    $region20: #{tpu_custom_call.1} parent=1 // pred_region
      %42 = vst [vmem:[#allocation7] sm:$0xff] 0.0
    $region21: #{tpu_custom_call.1} parent=1 // pred_fallthru
      _
    %v43 = vld [vmem:[#allocation7] sm:$0xff]
    %v44 = vld [vmem:[#allocation2] sm:$0xff]
    %v45 = vld [vmem:[#allocation5] sm:$0xff]
    %v46 = vld [vmem:[#allocation5 + $0x8] sm:$0xff]
    %v47 = vld [vmem:[#allocation5 + $0x10] sm:$0xff]
    %v48 = vld [vmem:[#allocation5 + $0x18] sm:$0xff]
    %v49 = vld [vmem:[#allocation5 + $0x20] sm:$0xff]
    %v50 = vld [vmem:[#allocation5 + $0x28] sm:$0xff]
    %v51 = vld [vmem:[#allocation5 + $0x30] sm:$0xff]
    %v52 = vld [vmem:[#allocation5 + $0x38] sm:$0xff]
    %v53 = vld [vmem:[#allocation5 + $0x40] sm:$0xff]
    %v54 = vld [vmem:[#allocation5 + $0x48] sm:$0xff]
    %v55 = vld [vmem:[#allocation5 + $0x50] sm:$0xff]
    %v56 = vld [vmem:[#allocation5 + $0x58] sm:$0xff]
    %v57 = vld [vmem:[#allocation5 + $0x60] sm:$0xff]
    %v58 = vld [vmem:[#allocation5 + $0x68] sm:$0xff]
    %v59 = vld [vmem:[#allocation5 + $0x70] sm:$0xff]
    %v60 = vld [vmem:[#allocation5 + $0x78] sm:$0xff]
    %61 = vmatprep.subr.mxu0 0.0
    %62 = vmatpush1.msra.mxu0 %v60
    %63 = vmatprep.subr.mxu0 0.0
    %64 = vmatpush1.msra.mxu0 %v59
    %65 = vmatprep.subr.mxu0 0.0
    %66 = vmatpush1.msra.mxu0 %v58
    %67 = vmatprep.subr.mxu0 0.0
    %68 = vmatpush1.msra.mxu0 %v57
    %69 = vmatprep.subr.mxu0 0.0
    %70 = vmatpush1.msra.mxu0 %v56
    %71 = vmatprep.subr.mxu0 0.0
    %72 = vmatpush1.msra.mxu0 %v55
    %73 = vmatprep.subr.mxu0 0.0
    %74 = vmatpush1.msra.mxu0 %v54
    %75 = vmatprep.subr.mxu0 0.0
    %76 = vmatpush1.msra.mxu0 %v53
    %77 = vmatprep.subr.mxu0 0.0
    %78 = vmatpush1.msra.mxu0 %v52
    %79 = vmatprep.subr.mxu0 0.0
    %80 = vmatpush1.msra.mxu0 %v51
    %81 = vmatprep.subr.mxu0 0.0
    %82 = vmatpush1.msra.mxu0 %v50
    %83 = vmatprep.subr.mxu0 0.0
    %84 = vmatpush1.msra.mxu0 %v49
    %85 = vmatprep.subr.mxu0 0.0
    %86 = vmatpush1.msra.mxu0 %v48
    %87 = vmatprep.subr.mxu0 0.0
    %88 = vmatpush1.msra.mxu0 %v47
    %89 = vmatprep.subr.mxu0 0.0
    %90 = vmatpush1.msra.mxu0 %v46
    %91 = vmatprep.subr.mxu0 0.0
    %92 = vmatpush1.msra.mxu0 %v45
    %93 = vmatprep.subr.mxu0 0.0
    %94 = vmatpush2.msra.mxu0 0.0
    %95 = vmatprep.subr.mxu0 0.0
    %96 = vmatpush2.msra.mxu0 0.0
    %97 = vmatprep.subr.mxu0 0.0
    %98 = vmatpush2.msra.mxu0 0.0
    %99 = vmatprep.subr.mxu0 0.0
    %100 = vmatpush2.msra.mxu0 0.0
    %101 = vmatprep.subr.mxu0 0.0
    %102 = vmatpush2.msra.mxu0 0.0
    %103 = vmatprep.subr.mxu0 0.0
    %104 = vmatpush2.msra.mxu0 0.0
    %105 = vmatprep.subr.mxu0 0.0
    %106 = vmatpush2.msra.mxu0 0.0
    %107 = vmatprep.subr.mxu0 0.0
    %108 = vmatpush2.msra.mxu0 0.0
    %109 = vmatprep.subr.mxu0 0.0
    %110 = vmatpush2.msra.mxu0 0.0
    %111 = vmatprep.subr.mxu0 0.0
    %112 = vmatpush2.msra.mxu0 0.0
    %113 = vmatprep.subr.mxu0 0.0
    %114 = vmatpush2.msra.mxu0 0.0
    %115 = vmatprep.subr.mxu0 0.0
    %116 = vmatpush2.msra.mxu0 0.0
    %117 = vmatprep.subr.mxu0 0.0
    %118 = vmatpush2.msra.mxu0 0.0
    %119 = vmatprep.subr.mxu0 0.0
    %120 = vmatpush2.msra.mxu0 0.0
    %121 = vmatprep.subr.mxu0 0.0
    %122 = vmatpush2.msra.mxu0 0.0
    %123 = vmatprep.subr.mxu0 0.0
    %124 = vmatpush2.msra.mxu0 0.0
    %125 = vmatprep.mubr.f32.mxu0 0.0
    %126 = vmatmul.mubr.f32.gmra.mxu0 %v44
    %v127 = vpop.f32.mrf.mxu0
    %v128 = vadd.f32 0.0, %v127
    %v129 = vpop.f32.mrf.mxu0
    %130 = vdwg.mxu0
    %v131 = vadd.f32 %v43, %v128
    %132 = vst [vmem:[#allocation7] sm:$0xff] %v131
    // Predicated region
    $region22: #{tpu_custom_call.1} parent=1 // pred_check
      _
    $region23: #{tpu_custom_call.1} parent=1 // pred_check_branch
      %134 = sbr.rel (0) target = $region25
    $region24: #{tpu_custom_call.1} parent=1 // pred_region
      %s136 = ssub.s32 128, 128
      %137 = vsyncadd [#allocation4], %s136
      %s139 = sshll.u32 [#allocation7], 4
      %s140 = int_to_ptr.vmem [resolvable:$true] %s139
      %142 = dma.vmem_to_hbm [thread:$0]  %s140, 128, %s2, [#allocation4]
    $region25: #{tpu_custom_call.1} parent=1 // pred_fallthru
      _
    // Predicated region
    $region26: #{tpu_custom_call.1} parent=1 // pred_check
      _
    $region27: #{tpu_custom_call.1} parent=1 // pred_check_branch
      %144 = sbr.rel (0) target = $region29
    $region28: #{tpu_custom_call.1} parent=1 // pred_region
      %145 = dma.done [#allocation4], 128
    $region29: #{tpu_custom_call.1} parent=1 // pred_fallthru
      _
    %146 = vsyncpa [#allocation3], 1
    %147 = vsyncpa [#allocation6], 1
    %148 = vsyncpa [#allocation4], 1

</llo_original>
